<compile_context>
chip_gen: v6e
topology: v6e:2x2x1
jax: 0.10.0
libtpu: 0.0.40
codegen_flags: <defaults>
</compile_context>

<pallas_src>
import jax
import jax.numpy as jnp
from jax import lax
from jax.experimental import pallas as pl
from jax.experimental.pallas import tpu as pltpu


def _make_navgpool_head_kernel(num_classes):
    """Builds the fused head kernel; num_classes = true (unpadded) label count."""
    L = num_classes

    def kernel(cls_ref, w_pool_ref, b_pool_ref, w_fc_ref, b_fc_ref, labels_ref,
               logits_ref, loss_ref):
        n_layers = cls_ref.shape[0]          # n
        tb = cls_ref.shape[1]                # batch block
        Lp = w_fc_ref.shape[1]               # lane-padded class count

        # BERT pooler on the last layer's CLS: tanh(cls @ W_pool + b_pool).
        # bf16 operands on the MXU, f32 accumulation, f32 elementwise (v5e-safe).
        cls_last = cls_ref[n_layers - 1]                                  # (tb, H) bf16
        pooler = jnp.tanh(
            jnp.dot(cls_last, w_pool_ref[...],
                    preferred_element_type=jnp.float32)
            + b_pool_ref[...])                                            # (tb, H) f32

        # torch.cat([cls_0..cls_{n-1}, pooler], 1) -> mean over dim 1:
        # one load of the whole (n, tb, H) block, reduced over the layer axis.
        cls_sum = jnp.sum(cls_ref[...].astype(jnp.float32), axis=0)       # (tb, H)
        mean_pool = (cls_sum + pooler) / jnp.float32(n_layers + 1)        # (tb, H)

        # dropout(p=0.2) is identity at inference.
        # TODO(synk): train-mode dropout (pltpu.prng_random_bits mask) not implemented.

        # fc classifier: Linear(H, L), lane-padded to Lp with zero columns.
        logits = (jnp.dot(mean_pool.astype(jnp.bfloat16), w_fc_ref[...],
                          preferred_element_type=jnp.float32)
                  + b_fc_ref[...])                                        # (tb, Lp) f32
        logits_ref[...] = logits

        # CrossEntropy per example (stable logsumexp); padded lanes masked out.
        lane = lax.broadcasted_iota(jnp.int32, (tb, Lp), 1)
        valid = lane < L
        z = jnp.where(valid, logits, jnp.float32(-1e30))
        m = jnp.max(z, axis=1, keepdims=True)                             # (tb, 1)
        lse = m + jnp.log(jnp.sum(jnp.exp(z - m), axis=1, keepdims=True))
        onehot = (labels_ref[...] == lane).astype(jnp.float32)            # (tb, Lp)
        picked = jnp.sum(logits * onehot, axis=1, keepdims=True)          # (tb, 1)
        loss_ref[...] = lse - picked                                      # per-example

    return kernel


def _pick_batch_block(B):
    """Single invocation for small B (grid steps ~0.35us each are pure overhead
    on single-TC v5e/v6e); split only when B is large enough for v7x's 2 TCs."""
    if B <= 512:
        return B
    for tb in (512, 256, 128, 64, 32, 16, 8):
        if B % tb == 0:
            return tb
    return B


def bert_navgpool_head(hidden_states, w_pool, b_pool, w_fc, b_fc, labels):
    """hidden_states: (n, B, S, H); returns (CE loss scalar, logits (B, L))."""
    n, B, S, H = hidden_states.shape
    L = w_fc.shape[1]
    Lp = ((L + 127) // 128) * 128                      # lane-dense class dim

    # --- wrapper-side data prep (dominant DMA win: drop the seq dimension) ---
    cls = hidden_states[:, :, 0, :].astype(jnp.bfloat16)          # (n, B, H)
    w_pool_bf = w_pool.astype(jnp.bfloat16)                       # (H, H)
    b_pool_f = b_pool.reshape(1, H).astype(jnp.float32)
    w_fc_p = jnp.zeros((H, Lp), jnp.bfloat16).at[:, :L].set(w_fc.astype(jnp.bfloat16))
    b_fc_p = jnp.zeros((1, Lp), jnp.float32).at[:, :L].set(b_fc.astype(jnp.float32))
    labels_2d = labels.reshape(B, 1).astype(jnp.int32)

    tb = _pick_batch_block(B)
    nb = B // tb

    # VMEM budget: bf16 CLS block + weights + biases + outputs, double-buffered.
    block_bytes = (n * tb * H * 2 + H * H * 2 + H * 4 + H * Lp * 2 + Lp * 4
                   + tb * 4 + tb * Lp * 4 + tb * 4)
    vmem_limit = int(min(100 * 2**20, max(4 * 2**20, 8 * block_bytes)))

    cost = pl.CostEstimate(
        flops=2 * B * H * H + 2 * B * H * Lp,
        transcendentals=B * H + B * Lp,          # tanh + exp
        bytes_accessed=(n * B * H * 2 + H * H * 2 + H * Lp * 2 + H * 4 + Lp * 4
                        + B * 4 + B * Lp * 4 + B * 4),
    )

    kernel = _make_navgpool_head_kernel(L)

    logits_padded, loss_vec = pl.pallas_call(
        kernel,
        out_shape=(jax.ShapeDtypeStruct((B, Lp), jnp.float32),
                   jax.ShapeDtypeStruct((B, 1), jnp.float32)),
        grid_spec=pltpu.PrefetchScalarGridSpec(
            num_scalar_prefetch=0,
            grid=(nb,),
            in_specs=[
                pl.BlockSpec((n, tb, H), lambda i: (0, i, 0)),     # CLS stack
                pl.BlockSpec((H, H), lambda i: (0, 0)),            # pooler W
                pl.BlockSpec((1, H), lambda i: (0, 0)),            # pooler b
                pl.BlockSpec((H, Lp), lambda i: (0, 0)),           # fc W (padded)
                pl.BlockSpec((1, Lp), lambda i: (0, 0)),           # fc b (padded)
                pl.BlockSpec((tb, 1), lambda i: (i, 0)),           # labels
            ],
            out_specs=[
                pl.BlockSpec((tb, Lp), lambda i: (i, 0)),          # logits (lane-dense)
                pl.BlockSpec((tb, 1), lambda i: (i, 0)),           # per-example CE
            ],
        ),
        compiler_params=pltpu.CompilerParams(
            dimension_semantics=("parallel",),
            vmem_limit_bytes=vmem_limit,
        ),
        cost_estimate=cost,
    )(cls, w_pool_bf, b_pool_f, w_fc_p, b_fc_p, labels_2d)

    logits = logits_padded[:, :L]
    loss = jnp.mean(loss_vec)
    return loss, logits


if __name__ == "__main__":
    n, B, S, H, L = 3, 8, 8, 32, 2   # small synthetic "BERT": hidden=32, seq=8

    key = jax.random.PRNGKey(0)
    ks = jax.random.split(key, 6)
    hidden_states = jax.random.normal(ks[0], (n, B, S, H), jnp.float32)
    w_pool = jax.random.normal(ks[1], (H, H), jnp.float32) / jnp.sqrt(H)
    b_pool = 0.02 * jax.random.normal(ks[2], (H,), jnp.float32)
    w_fc = jax.random.normal(ks[3], (H, L), jnp.float32) / jnp.sqrt(H)
    b_fc = 0.02 * jax.random.normal(ks[4], (L,), jnp.float32)
    labels = jax.random.randint(ks[5], (B,), 0, L)

    loss, logits = bert_navgpool_head(hidden_states, w_pool, b_pool, w_fc, b_fc, labels)
    jax.block_until_ready((loss, logits))

    # Pure-JAX reference with the same bf16-operand / f32-accumulate math.
    cls = hidden_states[:, :, 0, :].astype(jnp.bfloat16)                   # (n, B, H)
    pooler_ref = jnp.tanh(
        jnp.dot(cls[-1], w_pool.astype(jnp.bfloat16),
                preferred_element_type=jnp.float32) + b_pool)
    mean_pool_ref = (jnp.sum(cls.astype(jnp.float32), axis=0) + pooler_ref) / (n + 1)
    logits_ref = (jnp.dot(mean_pool_ref.astype(jnp.bfloat16), w_fc.astype(jnp.bfloat16),
                          preferred_element_type=jnp.float32) + b_fc)
    m_ref = jnp.max(logits_ref, axis=1, keepdims=True)
    lse_ref = (m_ref + jnp.log(jnp.sum(jnp.exp(logits_ref - m_ref),
                                       axis=1, keepdims=True)))[:, 0]
    picked_ref = jnp.take_along_axis(logits_ref, labels[:, None], axis=1)[:, 0]
    loss_ref = jnp.mean(lse_ref - picked_ref)

    assert jnp.allclose(logits, logits_ref, atol=1e-3, rtol=1e-3)
    assert jnp.allclose(loss, loss_ref, atol=1e-3, rtol=1e-3)
    print("KERNEL_OK")
</pallas_src>

<mosaic_0001>
module attributes {stable_mosaic.version = 11 : i64} {
  func.func @kernel(%arg0: i32, %arg1: memref<3x8x32xbf16, #tpu.memory_space<vmem>>, %arg2: memref<32x32xbf16, #tpu.memory_space<vmem>>, %arg3: memref<1x32xf32, #tpu.memory_space<vmem>>, %arg4: memref<32x128xbf16, #tpu.memory_space<vmem>>, %arg5: memref<1x128xf32, #tpu.memory_space<vmem>>, %arg6: memref<8x1xi32, #tpu.memory_space<vmem>>, %arg7: memref<8x128xf32, #tpu.memory_space<vmem>>, %arg8: memref<8x1xf32, #tpu.memory_space<vmem>>) attributes {dimension_semantics = [#tpu.dimension_semantics<parallel>], iteration_bounds = array<i64: 1>, scalar_prefetch = 0 : i64, scratch_operands = 0 : i64, tpu.core_type = #tpu.core_type<tc>, window_params = [{transform_indices = @transform_0, window_bounds = array<i64: 3, 8, 32>}, {pipeline_mode = #tpu.pipeline_mode<synchronous>, transform_indices = @transform_1, window_bounds = array<i64: 32, 32>}, {pipeline_mode = #tpu.pipeline_mode<synchronous>, transform_indices = @transform_2, window_bounds = array<i64: 1, 32>}, {pipeline_mode = #tpu.pipeline_mode<synchronous>, transform_indices = @transform_3, window_bounds = array<i64: 32, 128>}, {pipeline_mode = #tpu.pipeline_mode<synchronous>, transform_indices = @transform_4, window_bounds = array<i64: 1, 128>}, {transform_indices = @transform_5, window_bounds = array<i64: 8, 1>}, {transform_indices = @transform_6, window_bounds = array<i64: 8, 128>}, {transform_indices = @transform_7, window_bounds = array<i64: 8, 1>}]} {
    %c2 = arith.constant 2 : index
    %c0 = arith.constant 0 : index
    %c0_0 = arith.constant 0 : index
    %0 = vector.load %arg1[%c2, %c0, %c0_0] : memref<3x8x32xbf16, #tpu.memory_space<vmem>>, vector<1x8x32xbf16>
    %1 = vector.shape_cast %0 : vector<1x8x32xbf16> to vector<8x32xbf16>
    %c0_1 = arith.constant 0 : index
    %c0_2 = arith.constant 0 : index
    %2 = vector.load %arg2[%c0_1, %c0_2] : memref<32x32xbf16, #tpu.memory_space<vmem>>, vector<32x32xbf16>
    %cst = arith.constant dense<0.000000e+00> : vector<8x32xf32>
    %3 = tpu.matmul %1, %2, %cst {dimension_numbers = #tpu.dot_dimension_numbers<[1], [0], [0], [1], [0, 0, 1, 1], [], []>} : vector<8x32xbf16>, vector<32x32xbf16>, vector<8x32xf32> -> vector<8x32xf32>
    %c0_3 = arith.constant 0 : index
    %c0_4 = arith.constant 0 : index
    %4 = vector.load %arg3[%c0_3, %c0_4] : memref<1x32xf32, #tpu.memory_space<vmem>>, vector<1x32xf32>
    %5 = vector.broadcast %4 : vector<1x32xf32> to vector<8x32xf32>
    %6 = arith.addf %3, %5 : vector<8x32xf32>
    %7 = math.tanh %6 : vector<8x32xf32>
    %c0_5 = arith.constant 0 : index
    %c0_6 = arith.constant 0 : index
    %c0_7 = arith.constant 0 : index
    %8 = vector.load %arg1[%c0_5, %c0_6, %c0_7] : memref<3x8x32xbf16, #tpu.memory_space<vmem>>, vector<3x8x32xbf16>
    %9 = arith.extf %8 : vector<3x8x32xbf16> to vector<3x8x32xf32>
    %cst_8 = arith.constant dense<0.000000e+00> : vector<8x32xf32>
    %10 = vector.multi_reduction <add>, %9, %cst_8 [0] : vector<3x8x32xf32> to vector<8x32xf32>
    %11 = arith.addf %10, %7 : vector<8x32xf32>
    %cst_9 = arith.constant 4.000000e+00 : f32
    %12 = vector.broadcast %cst_9 : f32 to vector<8x32xf32>
    %13 = arith.divf %11, %12 : vector<8x32xf32>
    %14 = arith.truncf %13 : vector<8x32xf32> to vector<8x32xbf16>
    %c0_10 = arith.constant 0 : index
    %c0_11 = arith.constant 0 : index
    %15 = vector.load %arg4[%c0_10, %c0_11] : memref<32x128xbf16, #tpu.memory_space<vmem>>, vector<32x128xbf16>
    %cst_12 = arith.constant dense<0.000000e+00> : vector<8x128xf32>
    %16 = tpu.matmul %14, %15, %cst_12 {dimension_numbers = #tpu.dot_dimension_numbers<[1], [0], [0], [1], [0, 0, 1, 1], [], []>} : vector<8x32xbf16>, vector<32x128xbf16>, vector<8x128xf32> -> vector<8x128xf32>
    %c0_13 = arith.constant 0 : index
    %c0_14 = arith.constant 0 : index
    %17 = vector.load %arg5[%c0_13, %c0_14] : memref<1x128xf32, #tpu.memory_space<vmem>>, vector<1x128xf32>
    %18 = vector.broadcast %17 : vector<1x128xf32> to vector<8x128xf32>
    %19 = arith.addf %16, %18 : vector<8x128xf32>
    %c0_15 = arith.constant 0 : index
    %c0_16 = arith.constant 0 : index
    %20 = vector.load %arg7[%c0_15, %c0_16] : memref<8x128xf32, #tpu.memory_space<vmem>>, vector<8x128xf32>
    tpu.vector_store %arg7[%c0_15, %c0_16], %19 {strides = array<i32>} : memref<8x128xf32, #tpu.memory_space<vmem>>, vector<8x128xf32>,
    %21 = tpu.iota {dimensions = array<i32: 1>} : vector<8x128xi32>
    %c2_i32 = arith.constant 2 : i32
    %22 = vector.broadcast %c2_i32 : i32 to vector<8x128xi32>
    %23 = arith.cmpi slt, %21, %22 : vector<8x128xi32>
    %cst_17 = arith.constant -1.000000e+30 : f32
    %24 = vector.broadcast %cst_17 : f32 to vector<8x128xf32>
    %25 = arith.select %23, %19, %24 : vector<8x128xi1>, vector<8x128xf32>
    %cst_18 = arith.constant dense<0xFF800000> : vector<8xf32>
    %26 = vector.multi_reduction <maximumf>, %25, %cst_18 [1] : vector<8x128xf32> to vector<8xf32>
    %27 = vector.shape_cast %26 : vector<8xf32> to vector<8x1xf32>
    %28 = vector.broadcast %27 : vector<8x1xf32> to vector<8x128xf32>
    %29 = arith.subf %25, %28 : vector<8x128xf32>
    %30 = math.exp %29 : vector<8x128xf32>
    %cst_19 = arith.constant dense<0.000000e+00> : vector<8xf32>
    %31 = vector.multi_reduction <add>, %30, %cst_19 [1] : vector<8x128xf32> to vector<8xf32>
    %32 = vector.shape_cast %31 : vector<8xf32> to vector<8x1xf32>
    %33 = math.log %32 : vector<8x1xf32>
    %34 = arith.addf %27, %33 : vector<8x1xf32>
    %c0_20 = arith.constant 0 : index
    %c0_21 = arith.constant 0 : index
    %35 = vector.load %arg6[%c0_20, %c0_21] : memref<8x1xi32, #tpu.memory_space<vmem>>, vector<8x1xi32>
    %36 = vector.broadcast %35 : vector<8x1xi32> to vector<8x128xi32>
    %37 = arith.cmpi eq, %36, %21 : vector<8x128xi32>
    %38 = arith.extui %37 : vector<8x128xi1> to vector<8x128xi32>
    %39 = arith.sitofp %38 : vector<8x128xi32> to vector<8x128xf32>
    %40 = arith.mulf %19, %39 : vector<8x128xf32>
    %cst_22 = arith.constant dense<0.000000e+00> : vector<8xf32>
    %41 = vector.multi_reduction <add>, %40, %cst_22 [1] : vector<8x128xf32> to vector<8xf32>
    %42 = vector.shape_cast %41 : vector<8xf32> to vector<8x1xf32>
    %43 = arith.subf %34, %42 : vector<8x1xf32>
    %c0_23 = arith.constant 0 : index
    %c0_24 = arith.constant 0 : index
    %44 = vector.load %arg8[%c0_23, %c0_24] : memref<8x1xf32, #tpu.memory_space<vmem>>, vector<8x1xf32>
    tpu.vector_store %arg8[%c0_23, %c0_24], %43 {strides = array<i32>} : memref<8x1xf32, #tpu.memory_space<vmem>>, vector<8x1xf32>,
    return
  }
  func.func @transform_0(%arg0: i32) -> (i32, i32, i32) {
    %c0_i32 = arith.constant 0 : i32
    %c0_i32_0 = arith.constant 0 : i32
    %c0_i32_1 = arith.constant 0 : i32
    return %c0_i32, %arg0, %c0_i32_0 : i32, i32, i32
  }
  func.func @transform_1(%arg0: i32) -> (i32, i32) {
    %c0_i32 = arith.constant 0 : i32
    %c0_i32_0 = arith.constant 0 : i32
    %c0_i32_1 = arith.constant 0 : i32
    return %c0_i32, %c0_i32_0 : i32, i32
  }
  func.func @transform_2(%arg0: i32) -> (i32, i32) {
    %c0_i32 = arith.constant 0 : i32
    %c0_i32_0 = arith.constant 0 : i32
    %c0_i32_1 = arith.constant 0 : i32
    return %c0_i32, %c0_i32_0 : i32, i32
  }
  func.func @transform_3(%arg0: i32) -> (i32, i32) {
    %c0_i32 = arith.constant 0 : i32
    %c0_i32_0 = arith.constant 0 : i32
    %c0_i32_1 = arith.constant 0 : i32
    return %c0_i32, %c0_i32_0 : i32, i32
  }
  func.func @transform_4(%arg0: i32) -> (i32, i32) {
    %c0_i32 = arith.constant 0 : i32
    %c0_i32_0 = arith.constant 0 : i32
    %c0_i32_1 = arith.constant 0 : i32
    return %c0_i32, %c0_i32_0 : i32, i32
  }
  func.func @transform_5(%arg0: i32) -> (i32, i32) {
    %c0_i32 = arith.constant 0 : i32
    %c0_i32_0 = arith.constant 0 : i32
    return %arg0, %c0_i32 : i32, i32
  }
  func.func @transform_6(%arg0: i32) -> (i32, i32) {
    %c0_i32 = arith.constant 0 : i32
    %c0_i32_0 = arith.constant 0 : i32
    return %arg0, %c0_i32 : i32, i32
  }
  func.func @transform_7(%arg0: i32) -> (i32, i32) {
    %c0_i32 = arith.constant 0 : i32
    %c0_i32_0 = arith.constant 0 : i32
    return %arg0, %c0_i32 : i32, i32
  }
}

</mosaic_0001>

<llo_original>
// kernel: tpu_custom_call.1
$region0: #{tpu_custom_call.1}
  #allocation0 [shape = 'u32[]', space=smem, size = 0x4, offset = 0x4, fixed_abs, tag = 'smem constant byte address 0x4 - core index']
  #allocation1 [shape = 'u32[144,128]{1,0:T(1,128)}', space=vmem, size = 0x12000, scoped, tag = 'internal scratch']
  %s0 = inlined_call_operand.hbm [shape: bf16[3,8,32], index: 0, kind: input, shape index: {}]
  %s1 = inlined_call_operand.hbm [shape: bf16[32,32], index: 1, kind: input, shape index: {}]
  %s2 = inlined_call_operand.vmem [shape: f32[1,32], index: 2, kind: input, shape index: {}]
  %s3 = inlined_call_operand.hbm [shape: bf16[32,128], index: 3, kind: input, shape index: {}]
  %s4 = inlined_call_operand.vmem [shape: f32[1,128], index: 4, kind: input, shape index: {}]
  %s5 = inlined_call_operand.vmem [shape: s32[8,1], index: 5, kind: input, shape index: {}]
  %s6 = inlined_call_operand.hbm [shape: f32[8,128], index: 6, kind: output, shape index: {0}]
  %s7 = inlined_call_operand.vmem [shape: f32[8,1], index: 7, kind: output, shape index: {1}]
  %8 = xla_tuple %s6, %s7
  %s9 = sld [smem:[#allocation0]]
  $region54: #{tpu_custom_call.1} parent=0
    _
  %s11 = ssub.s32 1, %s9
  %s12 = scalar_select 0, %s11, %s9
  $region1: #{tpu_custom_call.1} parent=0
    #allocation2 [shape = 'u8[6144]{0}', space=vmem, size = 0x1800, scoped, tag = 'input window, operand 0, single buffered']
    #allocation3 [shape = 's32[1]{0}', space=sflag, size = 0x4, scoped, tag = 'scoped memory for tpu_custom_call.1']
    #allocation4 [shape = 's32[1]{0}', space=sflag, size = 0x4, scoped, tag = 'scoped memory for tpu_custom_call.1']
    #allocation5 [shape = 'u8[8192]{0}', space=vmem, size = 0x2000, scoped, tag = 'input window, operand 1, single buffered']
    #allocation6 [shape = 's32[1]{0}', space=sflag, size = 0x4, scoped, tag = 'scoped memory for tpu_custom_call.1']
    #allocation7 [shape = 'u8[8192]{0}', space=vmem, size = 0x2000, scoped, tag = 'input window, operand 3, single buffered']
    #allocation8 [shape = 'u8[4096]{0}', space=vmem, size = 0x1000, scoped, tag = 'output window, operand 0, single buffered']
    %13 = vsyncpa [#allocation3], 0
    %14 = vsyncpa [#allocation6], 0
    %15 = vsyncpa [#allocation4], 0
    // Predicated region
    $region2: #{tpu_custom_call.1} parent=1 // pred_check
      _
    $region3: #{tpu_custom_call.1} parent=1 // pred_check_branch
      %17 = sbr.rel (0) target = $region5
    $region4: #{tpu_custom_call.1} parent=1 // pred_region
      %s19 = ssub.s32 192, 192
      %20 = vsyncadd [#allocation3], %s19
      %s21 = sshll.u32 [#allocation2], 4
      %s22 = int_to_ptr.vmem [resolvable:$true] %s21
      %27 = dma.hbm_to_vmem [thread:$0]  %s0, 192, %s22, [#allocation3], 64, 64, 4
    $region5: #{tpu_custom_call.1} parent=1 // pred_fallthru
      _
    // Predicated region
    $region6: #{tpu_custom_call.1} parent=1 // pred_check
      _
    $region7: #{tpu_custom_call.1} parent=1 // pred_check_branch
      %29 = sbr.rel (0) target = $region9
    $region8: #{tpu_custom_call.1} parent=1 // pred_region
      %s31 = ssub.s32 256, 256
      %32 = vsyncadd [#allocation6], %s31
      %s33 = sshll.u32 [#allocation5], 4
      %s34 = int_to_ptr.vmem [resolvable:$true] %s33
      %39 = dma.hbm_to_vmem [thread:$0]  %s1, 256, %s34, [#allocation6], 64, 64, 4
    $region9: #{tpu_custom_call.1} parent=1 // pred_fallthru
      _
    // Predicated region
    $region10: #{tpu_custom_call.1} parent=1 // pred_check
      _
    $region11: #{tpu_custom_call.1} parent=1 // pred_check_branch
      %41 = sbr.rel (0) target = $region13
    $region12: #{tpu_custom_call.1} parent=1 // pred_region
      _
    $region13: #{tpu_custom_call.1} parent=1 // pred_fallthru
      _
    // Predicated region
    $region14: #{tpu_custom_call.1} parent=1 // pred_check
      _
    $region15: #{tpu_custom_call.1} parent=1 // pred_check_branch
      %43 = sbr.rel (0) target = $region17
    $region16: #{tpu_custom_call.1} parent=1 // pred_region
      %s45 = ssub.s32 256, 256
      %46 = vsyncadd [#allocation6], %s45
      %s47 = sshll.u32 [#allocation7], 4
      %s48 = int_to_ptr.vmem [resolvable:$true] %s47
      %53 = dma.hbm_to_vmem [thread:$0]  %s3, 256, %s48, [#allocation6], 64, 64, 4
    $region17: #{tpu_custom_call.1} parent=1 // pred_fallthru
      _
    // Predicated region
    $region18: #{tpu_custom_call.1} parent=1 // pred_check
      _
    $region19: #{tpu_custom_call.1} parent=1 // pred_check_branch
      %55 = sbr.rel (0) target = $region21
    $region20: #{tpu_custom_call.1} parent=1 // pred_region
      _
    $region21: #{tpu_custom_call.1} parent=1 // pred_fallthru
      _
    // Predicated region
    $region22: #{tpu_custom_call.1} parent=1 // pred_check
      _
    $region23: #{tpu_custom_call.1} parent=1 // pred_check_branch
      %57 = sbr.rel (0) target = $region25
    $region24: #{tpu_custom_call.1} parent=1 // pred_region
      _
    $region25: #{tpu_custom_call.1} parent=1 // pred_fallthru
      _
    // Predicated region
    $region26: #{tpu_custom_call.1} parent=1 // pred_check
      _
    $region27: #{tpu_custom_call.1} parent=1 // pred_check_branch
      %59 = sbr.rel (0) target = $region29
    $region28: #{tpu_custom_call.1} parent=1 // pred_region
      %60 = dma.done [#allocation3], 192
    $region29: #{tpu_custom_call.1} parent=1 // pred_fallthru
      _
    // Predicated region
    $region30: #{tpu_custom_call.1} parent=1 // pred_check
      _
    $region31: #{tpu_custom_call.1} parent=1 // pred_check_branch
      %62 = sbr.rel (0) target = $region33
    $region32: #{tpu_custom_call.1} parent=1 // pred_region
      %63 = dma.done [#allocation6], 256
    $region33: #{tpu_custom_call.1} parent=1 // pred_fallthru
      _
    // Predicated region
    $region34: #{tpu_custom_call.1} parent=1 // pred_check
      _
    $region35: #{tpu_custom_call.1} parent=1 // pred_check_branch
      %65 = sbr.rel (0) target = $region37
    $region36: #{tpu_custom_call.1} parent=1 // pred_region
      %66 = dma.done [#allocation6], 256
    $region37: #{tpu_custom_call.1} parent=1 // pred_fallthru
      _
    %s68 = scalar_lea.vmem [#allocation2], 8
    %v69 = vld [vmem:[%s68] sm:$0xf]
    %v70 = vld [vmem:[#allocation5] sm:$0xf]
    %v71 = vld [vmem:[#allocation5 + $0x4] sm:$0xf]
    %v72 = vld [vmem:[#allocation5 + $0x8] sm:$0xf]
    %v73 = vld [vmem:[#allocation5 + $0xc] sm:$0xf]
    %v74 = vld [vmem:[%s2] sm:$0x1]
    %v76 = vlaneseq
    %v77 = vshrl.u32 %v76, 7
    %v78 = vsub.s32 0, %v77
    %v79 = vrot.slane %v74, %v78
    %v85 = vunpack.c.l.b16 %v70
    %v86 = vunpack.c.l.b16 %v71
    %v87 = vunpack.c.l.b16 %v72
    %v88 = vunpack.c.l.b16 %v73
    %v89 = vpack.c.b16 %v86, %v85
    %v90 = vpack.c.b16 %v88, %v87
    %vm93 = vcmask 261120
    %v95 = vsel %vm93, %v69, 0
    %97 = vmatprep.subr.bf16.mxu0 0
    %98 = vmatpush1.bf16.msra.mxu0 0
    %99 = vmatprep.subr.bf16.mxu0 0
    %100 = vmatpush1.bf16.msra.mxu0 0
    %101 = vmatprep.subr.bf16.mxu0 0
    %102 = vmatpush1.bf16.msra.mxu0 0
    %103 = vmatprep.subr.bf16.mxu0 0
    %104 = vmatpush1.bf16.msra.mxu0 0
    %105 = vmatprep.subr.bf16.mxu0 0
    %106 = vmatpush1.bf16.msra.mxu0 0
    %107 = vmatprep.subr.bf16.mxu0 0
    %108 = vmatpush1.bf16.msra.mxu0 0
    %109 = vmatprep.subr.bf16.mxu0 0
    %110 = vmatpush1.bf16.msra.mxu0 %v90
    %111 = vmatprep.subr.bf16.mxu0 0
    %112 = vmatpush1.bf16.msra.mxu0 %v89
    %113 = vmatprep.subr.bf16.mxu0 0
    %114 = vmatpush2.bf16.msra.mxu0 0
    %115 = vmatprep.subr.bf16.mxu0 0
    %116 = vmatpush2.bf16.msra.mxu0 0
    %117 = vmatprep.subr.bf16.mxu0 0
    %118 = vmatpush2.bf16.msra.mxu0 0
    %119 = vmatprep.subr.bf16.mxu0 0
    %120 = vmatpush2.bf16.msra.mxu0 0
    %121 = vmatprep.subr.bf16.mxu0 0
    %122 = vmatpush2.bf16.msra.mxu0 0
    %123 = vmatprep.subr.bf16.mxu0 0
    %124 = vmatpush2.bf16.msra.mxu0 0
    %125 = vmatprep.subr.bf16.mxu0 0
    %126 = vmatpush2.bf16.msra.mxu0 0
    %127 = vmatprep.subr.bf16.mxu0 0
    %128 = vmatpush2.bf16.msra.mxu0 0
    %129 = vmatprep.mubr.bf16.mxu0 0
    %130 = vmatmul.mubr.bf16.gmra.mxu0 %v95
    %v131 = vpop.f32.mrf.mxu0
    %v132 = vadd.f32 %v79, %v131
    %v133 = vpop.f32.mrf.mxu0
    %v134 = vpop.f32.mrf.mxu0
    %v135 = vpop.f32.mrf.mxu0
    %136 = vdwg.mxu0
    %v137 = vtanh.pop %v132
    %v138 = vld [vmem:[#allocation2] sm:$0xf]
    %v139 = vld [vmem:[#allocation2 + $0x4] sm:$0xf]
    %v140 = vld [vmem:[#allocation2 + $0x8] sm:$0xf]
    %v141 = vunpack.c.l.bf16 %v138
    %v142 = vunpack.c.l.bf16 %v139
    %v143 = vunpack.c.l.bf16 %v140
    %v144 = vsel %vm93, %v141, 0.0
    %v145 = vsel %vm93, %v142, 0.0
    %v146 = vadd.f32 %v144, %v145
    %v147 = vsel %vm93, %v143, 0.0
    %v148 = vadd.f32 %v146, %v147
    %v149 = vadd.f32 %v148, %v137
    %v150 = vrcp.pop 4.0
    %v151 = vmul.f32 %v149, %v150
    %v152 = vpack.c.bf16 %v151, %v151
    %v153 = vld [vmem:[#allocation7] sm:$0xf]
    %v154 = vld [vmem:[#allocation7 + $0x4] sm:$0xf]
    %v155 = vld [vmem:[#allocation7 + $0x8] sm:$0xf]
    %v156 = vld [vmem:[#allocation7 + $0xc] sm:$0xf]
    %v157 = vld [vmem:[%s4] sm:$0x1]
    %v159 = vlaneseq
    %v160 = vshrl.u32 %v159, 7
    %v161 = vsub.s32 0, %v160
    %v162 = vrot.slane %v157, %v161
    %v168 = vunpack.c.l.b16 %v153
    %v169 = vunpack.c.l.b16 %v154
    %v170 = vunpack.c.l.b16 %v155
    %v171 = vunpack.c.l.b16 %v156
    %v172 = vpack.c.b16 %v169, %v168
    %v173 = vpack.c.b16 %v171, %v170
    %v177 = vsel %vm93, %v152, 0
    %179 = vmatprep.subr.bf16.mxu0 0
    %180 = vmatpush1.bf16.msra.mxu0 0
    %181 = vmatprep.subr.bf16.mxu0 0
    %182 = vmatpush1.bf16.msra.mxu0 0
    %183 = vmatprep.subr.bf16.mxu0 0
    %184 = vmatpush1.bf16.msra.mxu0 0
    %185 = vmatprep.subr.bf16.mxu0 0
    %186 = vmatpush1.bf16.msra.mxu0 0
    %187 = vmatprep.subr.bf16.mxu0 0
    %188 = vmatpush1.bf16.msra.mxu0 0
    %189 = vmatprep.subr.bf16.mxu0 0
    %190 = vmatpush1.bf16.msra.mxu0 0
    %191 = vmatprep.subr.bf16.mxu0 0
    %192 = vmatpush1.bf16.msra.mxu0 %v173
    %193 = vmatprep.subr.bf16.mxu0 0
    %194 = vmatpush1.bf16.msra.mxu0 %v172
    %195 = vmatprep.subr.bf16.mxu0 0
    %196 = vmatpush2.bf16.msra.mxu0 0
    %197 = vmatprep.subr.bf16.mxu0 0
    %198 = vmatpush2.bf16.msra.mxu0 0
    %199 = vmatprep.subr.bf16.mxu0 0
    %200 = vmatpush2.bf16.msra.mxu0 0
    %201 = vmatprep.subr.bf16.mxu0 0
    %202 = vmatpush2.bf16.msra.mxu0 0
    %203 = vmatprep.subr.bf16.mxu0 0
    %204 = vmatpush2.bf16.msra.mxu0 0
    %205 = vmatprep.subr.bf16.mxu0 0
    %206 = vmatpush2.bf16.msra.mxu0 0
    %207 = vmatprep.subr.bf16.mxu0 0
    %208 = vmatpush2.bf16.msra.mxu0 0
    %209 = vmatprep.subr.bf16.mxu0 0
    %210 = vmatpush2.bf16.msra.mxu0 0
    %211 = vmatprep.mubr.bf16.mxu0 0
    %212 = vmatmul.mubr.bf16.gmra.mxu0 %v177
    %v213 = vpop.f32.mrf.mxu0
    %v214 = vadd.f32 %v162, %v213
    %v215 = vpop.f32.mrf.mxu0
    %v216 = vpop.f32.mrf.mxu0
    %v217 = vpop.f32.mrf.mxu0
    %218 = vdwg.mxu0
    %219 = vst [vmem:[#allocation8] sm:$0xff] %v214
    %v220 = vlaneseq
    %v221 = vand.u32 %v220, 127
    %vm222 = vcmp.lt.s32.totalorder %v221, 2
    %v223 = vsel %vm222, %v214, -1e+30
    %224 = vmax.xlane.f32.xlu0 %v223
    %v225 = vpop.xlane.xlu0 %224
    %v226 = vsub.f32 %v223, %v225
    %v227 = vmul.f32 %v226, 1.442695
    %v228 = vpow.pop %v227
    %229 = vadd.xlane.f32.xlu0 %v228
    %v230 = vpop.xlane.xlu0 %229
    %v231 = vlog2.pop %v230
    %v232 = vmul.f32 %v231, 0.6931472
    %v233 = vadd.f32 %v225, %v232
    %v234 = vld [vmem:[%s5] sm:$0xff]
    %235 = vset.pattern.permute.xlu0 0
    %236 = vperm.xlu0 %235, %v234
    %v237 = vpop.permute.xlu0 %236
    %vm238 = vcmp.eq.s32.totalorder %v237, %v221
    %v239 = vsel %vm238, 1, 0
    %v240 = vcvt.s32.f32 %v239
    %v241 = vmul.f32 %v214, %v240
    %242 = vadd.xlane.f32.xlu0 %v241
    %v243 = vpop.xlane.xlu0 %242
    %v244 = vsub.f32 %v233, %v243
    %vm245 = vcmask 7168
    %246 = vst.msk [vmem:[%s7] sm:$0xff] %vm245, %v244
    // Predicated region
    $region38: #{tpu_custom_call.1} parent=1 // pred_check
      _
    $region39: #{tpu_custom_call.1} parent=1 // pred_check_branch
      %248 = sbr.rel (0) target = $region41
    $region40: #{tpu_custom_call.1} parent=1 // pred_region
      %s250 = ssub.s32 128, 128
      %251 = vsyncadd [#allocation4], %s250
      %s253 = sshll.u32 [#allocation8], 4
      %s254 = int_to_ptr.vmem [resolvable:$true] %s253
      %256 = dma.vmem_to_hbm [thread:$0]  %s254, 128, %s6, [#allocation4]
    $region41: #{tpu_custom_call.1} parent=1 // pred_fallthru
      _
    // Predicated region
    $region42: #{tpu_custom_call.1} parent=1 // pred_check
      _
    $region43: #{tpu_custom_call.1} parent=1 // pred_check_branch
      %258 = sbr.rel (0) target = $region45
    $region44: #{tpu_custom_call.1} parent=1 // pred_region
      _
    $region45: #{tpu_custom_call.1} parent=1 // pred_fallthru
      _
    // Predicated region
    $region46: #{tpu_custom_call.1} parent=1 // pred_check
      _
    $region47: #{tpu_custom_call.1} parent=1 // pred_check_branch
      %260 = sbr.rel (0) target = $region49
    $region48: #{tpu_custom_call.1} parent=1 // pred_region
      %261 = dma.done [#allocation4], 128
    $region49: #{tpu_custom_call.1} parent=1 // pred_fallthru
      _
    // Predicated region
    $region50: #{tpu_custom_call.1} parent=1 // pred_check
      _
    $region51: #{tpu_custom_call.1} parent=1 // pred_check_branch
      %263 = sbr.rel (0) target = $region53
    $region52: #{tpu_custom_call.1} parent=1 // pred_region
      _
    $region53: #{tpu_custom_call.1} parent=1 // pred_fallthru
      _
    %264 = vsyncpa [#allocation3], 1
    %265 = vsyncpa [#allocation6], 1
    %266 = vsyncpa [#allocation4], 1

</llo_original>
